<compile_context>
chip_gen: v7x
topology: tpu7x:2x2x1
jax: 0.10.0
libtpu: 0.0.40
codegen_flags: <defaults>
</compile_context>

<pallas_src>
import jax
import jax.numpy as jnp
from jax.experimental import pallas as pl
from jax.experimental.pallas import tpu as pltpu

LATENT_DIM = 32              # args.latent_dim
COND_FEATS = 100             # cond flattens to 100 features (1*50*2)
HIDDEN = 100                 # logical hidden / output width
HIDDEN_PAD = 128             # lane-dense padded hidden width
DEFAULT_BLOCK_B = 4096       # batch rows per grid step
VMEM_LIMIT_BYTES = 40 * 1024 * 1024  # < v7x 64 MiB/TC; > v5e 16 MiB scoped default


def _cdiv(a, m):
    return (a + m - 1) // m


def _round_up(x, m):
    return _cdiv(x, m) * m


def _choose_block(B, block_b):
    """Balanced, sublane-aligned batch tiling.

    - At least ceil(B/block_b) tiles; at least 2 tiles once B >= 16 so the
      ("parallel",) grid axis can be sharded across both v7x TensorCores.
    - bb = round_up(ceil(B / n_tiles), 8) balances tiles so ragged-tail
      padding is at most 7 rows per tile (vs. padding B up to a fixed block).
    """
    n_tiles = _cdiv(B, block_b)
    if B >= 16:
        n_tiles = max(n_tiles, 2)
    bb = _round_up(_cdiv(B, n_tiles), 8)
    b_pad = _round_up(B, bb)
    return bb, b_pad


def decoder_kernel(z_ref, c_ref, w1z_ref, w1c_ref, b1_ref,
                   w2_ref, b2_ref, w3_ref, b3_ref, o_ref):
    # Operand dtype for the MXU (f32 by default, bf16 on the opt-in path).
    cdt = w2_ref.dtype
    # fc1 + ReLU, concat fused:  [z, cond] @ W1 = z@W1[:L] + cond@W1[L:]
    h = jnp.dot(z_ref[...], w1z_ref[...], preferred_element_type=jnp.float32)
    h = h + jnp.dot(c_ref[...], w1c_ref[...], preferred_element_type=jnp.float32)
    h = jnp.maximum(h + b1_ref[...], 0.0)                       # (bb, 128) f32
    # fc2 + ReLU
    h = jnp.dot(h.astype(cdt), w2_ref[...], preferred_element_type=jnp.float32)
    h = jnp.maximum(h + b2_ref[...], 0.0)                       # (bb, 128) f32
    # fc3 + ReLU — W3 keeps its logical 100-wide output so the store is
    # already the final shape (no wrapper lane-slice).
    h = jnp.dot(h.astype(cdt), w3_ref[...], preferred_element_type=jnp.float32)
    h = jnp.maximum(h + b3_ref[...], 0.0)                       # (bb, 100) f32
    o_ref[...] = h.astype(o_ref.dtype)


def prepare_params(params, *, use_bf16=False):
    """Split W1 into z/cond parts, zero-pad hidden 100 -> 128 lanes.

    W3 is padded only on its input dim (128, 100) so the kernel writes the
    logical 100-wide output directly.  Biases stay f32 (added after the f32
    accumulate); weights optionally cast to bf16 for the opt-in fast path.
    """
    w1, b1, w2, b2, w3, b3 = params
    wdt = jnp.bfloat16 if use_bf16 else jnp.float32
    pad = HIDDEN_PAD - HIDDEN

    w1p = jnp.pad(w1.astype(jnp.float32), ((0, 0), (0, pad)))    # (132, 128)
    w1z = w1p[:LATENT_DIM].astype(wdt)                           # (32, 128)
    w1c = w1p[LATENT_DIM:].astype(wdt)                           # (100, 128)
    b1p = jnp.pad(b1.astype(jnp.float32), (0, pad)).reshape(1, HIDDEN_PAD)
    w2p = jnp.pad(w2.astype(jnp.float32), ((0, pad), (0, pad))).astype(wdt)  # (128, 128)
    b2p = jnp.pad(b2.astype(jnp.float32), (0, pad)).reshape(1, HIDDEN_PAD)
    w3p = jnp.pad(w3.astype(jnp.float32), ((0, pad), (0, 0))).astype(wdt)    # (128, 100)
    b3p = b3.astype(jnp.float32).reshape(1, HIDDEN)
    return (w1z, w1c, b1p, w2p, b2p, w3p, b3p)


def decoder_forward(z, cond, kernel_params, *,
                    block_b=DEFAULT_BLOCK_B, use_bf16=False):
    """z: (B, latent_dim); cond: any shape flattening to (B, 100)."""
    B = z.shape[0]
    act_dt = jnp.bfloat16 if use_bf16 else jnp.float32
    z = z.astype(act_dt)
    cond_flat = cond.reshape(B, -1).astype(act_dt)
    assert cond_flat.shape[1] == COND_FEATS

    w1z, w1c, b1, w2, b2, w3, b3 = kernel_params

    bb, b_pad = _choose_block(B, block_b)
    if b_pad != B:
        z = jnp.pad(z, ((0, b_pad - B), (0, 0)))
        cond_flat = jnp.pad(cond_flat, ((0, b_pad - B), (0, 0)))

    grid = (b_pad // bb,)

    act_isize = jnp.dtype(act_dt).itemsize
    w_isize = jnp.dtype(w2.dtype).itemsize
    act_in_bytes = b_pad * (LATENT_DIM + COND_FEATS) * act_isize
    act_out_bytes = b_pad * HIDDEN * 4
    weight_bytes = (LATENT_DIM * HIDDEN_PAD + COND_FEATS * HIDDEN_PAD
                    + HIDDEN_PAD * HIDDEN_PAD + HIDDEN_PAD * HIDDEN) * w_isize \
                   + (2 * HIDDEN_PAD + HIDDEN) * 4
    flops = 2 * b_pad * (LATENT_DIM * HIDDEN_PAD + COND_FEATS * HIDDEN_PAD
                         + HIDDEN_PAD * HIDDEN_PAD + HIDDEN_PAD * HIDDEN)

    out = pl.pallas_call(
        decoder_kernel,
        out_shape=jax.ShapeDtypeStruct((b_pad, HIDDEN), jnp.float32),
        grid=grid,
        in_specs=[
            # batch-tiled activations (double-buffered by the pipeline)
            pl.BlockSpec((bb, LATENT_DIM), lambda i: (i, 0)),
            pl.BlockSpec((bb, COND_FEATS), lambda i: (i, 0)),
            # weights / biases: constant index_map -> resident in VMEM
            pl.BlockSpec((LATENT_DIM, HIDDEN_PAD), lambda i: (0, 0)),
            pl.BlockSpec((COND_FEATS, HIDDEN_PAD), lambda i: (0, 0)),
            pl.BlockSpec((1, HIDDEN_PAD), lambda i: (0, 0)),
            pl.BlockSpec((HIDDEN_PAD, HIDDEN_PAD), lambda i: (0, 0)),
            pl.BlockSpec((1, HIDDEN_PAD), lambda i: (0, 0)),
            pl.BlockSpec((HIDDEN_PAD, HIDDEN), lambda i: (0, 0)),
            pl.BlockSpec((1, HIDDEN), lambda i: (0, 0)),
        ],
        out_specs=pl.BlockSpec((bb, HIDDEN), lambda i: (i, 0)),
        compiler_params=pltpu.CompilerParams(
            dimension_semantics=("parallel",),
            vmem_limit_bytes=VMEM_LIMIT_BYTES),
        cost_estimate=pl.CostEstimate(
            flops=flops,
            transcendentals=0,
            bytes_accessed=act_in_bytes + act_out_bytes + weight_bytes),
    )(z, cond_flat, w1z, w1c, b1, w2, b2, w3, b3)

    if b_pad != B:
        out = out[:B]
    # Matches torch's x.view(x.shape[0], 1, 50, 2); free view when b_pad == B.
    return out.reshape(B, 1, 50, 2)


def init_params(key):
    """Deterministic params in the logical (unpadded) shapes of the module."""
    k1, k2, k3, k4, k5, k6 = jax.random.split(key, 6)
    in1 = COND_FEATS + LATENT_DIM
    w1 = jax.random.normal(k1, (in1, HIDDEN), jnp.float32) * 0.05
    b1 = jax.random.normal(k2, (HIDDEN,), jnp.float32) * 0.05
    w2 = jax.random.normal(k3, (HIDDEN, HIDDEN), jnp.float32) * 0.05
    b2 = jax.random.normal(k4, (HIDDEN,), jnp.float32) * 0.05
    w3 = jax.random.normal(k5, (HIDDEN, HIDDEN), jnp.float32) * 0.05
    b3 = jax.random.normal(k6, (HIDDEN,), jnp.float32) * 0.05
    return (w1, b1, w2, b2, w3, b3)


def reference_forward(z, cond, params):
    """Pure-JAX reference mirroring the PyTorch module (unpadded weights)."""
    w1, b1, w2, b2, w3, b3 = params
    x = jnp.concatenate([z, cond.reshape(z.shape[0], -1)], axis=1)
    x = jnp.maximum(x @ w1 + b1, 0.0)
    x = jnp.maximum(x @ w2 + b2, 0.0)
    x = jnp.maximum(x @ w3 + b3, 0.0)
    return x.reshape(x.shape[0], 1, 50, 2)


if __name__ == "__main__":
    key = jax.random.PRNGKey(0)
    kz, kc, kp = jax.random.split(key, 3)

    params = init_params(kp)
    kparams = prepare_params(params)          # default f32 path (1e-5 accurate)

    # Small single-tile case (B=2).
    B = 2
    z = jax.random.normal(kz, (B, LATENT_DIM), jnp.float32)
    cond = jax.random.normal(kc, (B, 1, 50, 2), jnp.float32)
    out = jax.block_until_ready(decoder_forward(z, cond, kparams))
    ref = reference_forward(z, cond, params)
    assert out.shape == (B, 1, 50, 2), out.shape
    assert jnp.allclose(out, ref, atol=1e-5, rtol=1e-4), "mismatch vs reference (B=2)"

    # Multi-tile case (B=50 -> 2 grid steps + ragged-tail batch padding).
    kz2, kc2 = jax.random.split(jax.random.PRNGKey(1), 2)
    B2 = 50
    z2 = jax.random.normal(kz2, (B2, LATENT_DIM), jnp.float32)
    cond2 = jax.random.normal(kc2, (B2, 1, 50, 2), jnp.float32)
    out2 = jax.block_until_ready(decoder_forward(z2, cond2, kparams))
    ref2 = reference_forward(z2, cond2, params)
    assert out2.shape == (B2, 1, 50, 2), out2.shape
    assert jnp.allclose(out2, ref2, atol=1e-5, rtol=1e-4), "mismatch vs reference (B=50)"

    print("KERNEL_OK")
</pallas_src>

<mosaic_0001>
module attributes {stable_mosaic.version = 11 : i64} {
  func.func @decoder_kernel(%arg0: i32, %arg1: memref<8x32xf32, #tpu.memory_space<vmem>>, %arg2: memref<8x100xf32, #tpu.memory_space<vmem>>, %arg3: memref<32x128xf32, #tpu.memory_space<vmem>>, %arg4: memref<100x128xf32, #tpu.memory_space<vmem>>, %arg5: memref<1x128xf32, #tpu.memory_space<vmem>>, %arg6: memref<128x128xf32, #tpu.memory_space<vmem>>, %arg7: memref<1x128xf32, #tpu.memory_space<vmem>>, %arg8: memref<128x100xf32, #tpu.memory_space<vmem>>, %arg9: memref<1x100xf32, #tpu.memory_space<vmem>>, %arg10: memref<8x100xf32, #tpu.memory_space<vmem>>) attributes {dimension_semantics = [#tpu.dimension_semantics<parallel>], iteration_bounds = array<i64: 1>, scalar_prefetch = 0 : i64, scratch_operands = 0 : i64, tpu.core_type = #tpu.core_type<tc>, window_params = [{transform_indices = @transform_0, window_bounds = array<i64: 8, 32>}, {transform_indices = @transform_1, window_bounds = array<i64: 8, 100>}, {pipeline_mode = #tpu.pipeline_mode<synchronous>, transform_indices = @transform_2, window_bounds = array<i64: 32, 128>}, {pipeline_mode = #tpu.pipeline_mode<synchronous>, transform_indices = @transform_3, window_bounds = array<i64: 100, 128>}, {pipeline_mode = #tpu.pipeline_mode<synchronous>, transform_indices = @transform_4, window_bounds = array<i64: 1, 128>}, {pipeline_mode = #tpu.pipeline_mode<synchronous>, transform_indices = @transform_5, window_bounds = array<i64: 128, 128>}, {pipeline_mode = #tpu.pipeline_mode<synchronous>, transform_indices = @transform_6, window_bounds = array<i64: 1, 128>}, {pipeline_mode = #tpu.pipeline_mode<synchronous>, transform_indices = @transform_7, window_bounds = array<i64: 128, 100>}, {pipeline_mode = #tpu.pipeline_mode<synchronous>, transform_indices = @transform_8, window_bounds = array<i64: 1, 100>}, {transform_indices = @transform_9, window_bounds = array<i64: 8, 100>}]} {
    %c0 = arith.constant 0 : index
    %c0_0 = arith.constant 0 : index
    %0 = vector.load %arg1[%c0, %c0_0] : memref<8x32xf32, #tpu.memory_space<vmem>>, vector<8x32xf32>
    %c0_1 = arith.constant 0 : index
    %c0_2 = arith.constant 0 : index
    %1 = vector.load %arg3[%c0_1, %c0_2] : memref<32x128xf32, #tpu.memory_space<vmem>>, vector<32x128xf32>
    %cst = arith.constant dense<0.000000e+00> : vector<8x128xf32>
    %2 = tpu.matmul %0, %1, %cst {dimension_numbers = #tpu.dot_dimension_numbers<[1], [0], [0], [1], [0, 0, 1, 1], [], []>} : vector<8x32xf32>, vector<32x128xf32>, vector<8x128xf32> -> vector<8x128xf32>
    %c0_3 = arith.constant 0 : index
    %c0_4 = arith.constant 0 : index
    %3 = vector.load %arg2[%c0_3, %c0_4] : memref<8x100xf32, #tpu.memory_space<vmem>>, vector<8x100xf32>
    %c0_5 = arith.constant 0 : index
    %c0_6 = arith.constant 0 : index
    %4 = vector.load %arg4[%c0_5, %c0_6] : memref<100x128xf32, #tpu.memory_space<vmem>>, vector<100x128xf32>
    %cst_7 = arith.constant dense<0.000000e+00> : vector<8x128xf32>
    %5 = tpu.matmul %3, %4, %cst_7 {dimension_numbers = #tpu.dot_dimension_numbers<[1], [0], [0], [1], [0, 0, 1, 1], [], []>} : vector<8x100xf32>, vector<100x128xf32>, vector<8x128xf32> -> vector<8x128xf32>
    %6 = arith.addf %2, %5 : vector<8x128xf32>
    %c0_8 = arith.constant 0 : index
    %c0_9 = arith.constant 0 : index
    %7 = vector.load %arg5[%c0_8, %c0_9] : memref<1x128xf32, #tpu.memory_space<vmem>>, vector<1x128xf32>
    %8 = vector.broadcast %7 : vector<1x128xf32> to vector<8x128xf32>
    %9 = arith.addf %6, %8 : vector<8x128xf32>
    %cst_10 = arith.constant 0.000000e+00 : f32
    %10 = vector.broadcast %cst_10 : f32 to vector<8x128xf32>
    %11 = arith.maximumf %9, %10 : vector<8x128xf32>
    %c0_11 = arith.constant 0 : index
    %c0_12 = arith.constant 0 : index
    %12 = vector.load %arg6[%c0_11, %c0_12] : memref<128x128xf32, #tpu.memory_space<vmem>>, vector<128x128xf32>
    %cst_13 = arith.constant dense<0.000000e+00> : vector<8x128xf32>
    %13 = tpu.matmul %11, %12, %cst_13 {dimension_numbers = #tpu.dot_dimension_numbers<[1], [0], [0], [1], [0, 0, 1, 1], [], []>} : vector<8x128xf32>, vector<128x128xf32>, vector<8x128xf32> -> vector<8x128xf32>
    %c0_14 = arith.constant 0 : index
    %c0_15 = arith.constant 0 : index
    %14 = vector.load %arg7[%c0_14, %c0_15] : memref<1x128xf32, #tpu.memory_space<vmem>>, vector<1x128xf32>
    %15 = vector.broadcast %14 : vector<1x128xf32> to vector<8x128xf32>
    %16 = arith.addf %13, %15 : vector<8x128xf32>
    %cst_16 = arith.constant 0.000000e+00 : f32
    %17 = vector.broadcast %cst_16 : f32 to vector<8x128xf32>
    %18 = arith.maximumf %16, %17 : vector<8x128xf32>
    %c0_17 = arith.constant 0 : index
    %c0_18 = arith.constant 0 : index
    %19 = vector.load %arg8[%c0_17, %c0_18] : memref<128x100xf32, #tpu.memory_space<vmem>>, vector<128x100xf32>
    %cst_19 = arith.constant dense<0.000000e+00> : vector<8x100xf32>
    %20 = tpu.matmul %18, %19, %cst_19 {dimension_numbers = #tpu.dot_dimension_numbers<[1], [0], [0], [1], [0, 0, 1, 1], [], []>} : vector<8x128xf32>, vector<128x100xf32>, vector<8x100xf32> -> vector<8x100xf32>
    %c0_20 = arith.constant 0 : index
    %c0_21 = arith.constant 0 : index
    %21 = vector.load %arg9[%c0_20, %c0_21] : memref<1x100xf32, #tpu.memory_space<vmem>>, vector<1x100xf32>
    %22 = vector.broadcast %21 : vector<1x100xf32> to vector<8x100xf32>
    %23 = arith.addf %20, %22 : vector<8x100xf32>
    %cst_22 = arith.constant 0.000000e+00 : f32
    %24 = vector.broadcast %cst_22 : f32 to vector<8x100xf32>
    %25 = arith.maximumf %23, %24 : vector<8x100xf32>
    %c0_23 = arith.constant 0 : index
    %c0_24 = arith.constant 0 : index
    %26 = vector.load %arg10[%c0_23, %c0_24] : memref<8x100xf32, #tpu.memory_space<vmem>>, vector<8x100xf32>
    tpu.vector_store %arg10[%c0_23, %c0_24], %25 {strides = array<i32>} : memref<8x100xf32, #tpu.memory_space<vmem>>, vector<8x100xf32>,
    return
  }
  func.func @transform_0(%arg0: i32) -> (i32, i32) {
    %c0_i32 = arith.constant 0 : i32
    %c0_i32_0 = arith.constant 0 : i32
    return %arg0, %c0_i32 : i32, i32
  }
  func.func @transform_1(%arg0: i32) -> (i32, i32) {
    %c0_i32 = arith.constant 0 : i32
    %c0_i32_0 = arith.constant 0 : i32
    return %arg0, %c0_i32 : i32, i32
  }
  func.func @transform_2(%arg0: i32) -> (i32, i32) {
    %c0_i32 = arith.constant 0 : i32
    %c0_i32_0 = arith.constant 0 : i32
    %c0_i32_1 = arith.constant 0 : i32
    return %c0_i32, %c0_i32_0 : i32, i32
  }
  func.func @transform_3(%arg0: i32) -> (i32, i32) {
    %c0_i32 = arith.constant 0 : i32
    %c0_i32_0 = arith.constant 0 : i32
    %c0_i32_1 = arith.constant 0 : i32
    return %c0_i32, %c0_i32_0 : i32, i32
  }
  func.func @transform_4(%arg0: i32) -> (i32, i32) {
    %c0_i32 = arith.constant 0 : i32
    %c0_i32_0 = arith.constant 0 : i32
    %c0_i32_1 = arith.constant 0 : i32
    return %c0_i32, %c0_i32_0 : i32, i32
  }
  func.func @transform_5(%arg0: i32) -> (i32, i32) {
    %c0_i32 = arith.constant 0 : i32
    %c0_i32_0 = arith.constant 0 : i32
    %c0_i32_1 = arith.constant 0 : i32
    return %c0_i32, %c0_i32_0 : i32, i32
  }
  func.func @transform_6(%arg0: i32) -> (i32, i32) {
    %c0_i32 = arith.constant 0 : i32
    %c0_i32_0 = arith.constant 0 : i32
    %c0_i32_1 = arith.constant 0 : i32
    return %c0_i32, %c0_i32_0 : i32, i32
  }
  func.func @transform_7(%arg0: i32) -> (i32, i32) {
    %c0_i32 = arith.constant 0 : i32
    %c0_i32_0 = arith.constant 0 : i32
    %c0_i32_1 = arith.constant 0 : i32
    return %c0_i32, %c0_i32_0 : i32, i32
  }
  func.func @transform_8(%arg0: i32) -> (i32, i32) {
    %c0_i32 = arith.constant 0 : i32
    %c0_i32_0 = arith.constant 0 : i32
    %c0_i32_1 = arith.constant 0 : i32
    return %c0_i32, %c0_i32_0 : i32, i32
  }
  func.func @transform_9(%arg0: i32) -> (i32, i32) {
    %c0_i32 = arith.constant 0 : i32
    %c0_i32_0 = arith.constant 0 : i32
    return %arg0, %c0_i32 : i32, i32
  }
}

</mosaic_0001>

<llo_original>
// kernel: tpu_custom_call.1
$region0: #{tpu_custom_call.1}
  #allocation0 [shape = 'u32[]', space=smem, size = 0x4, offset = 0x4, fixed_abs, tag = 'smem constant byte address 0x4 - core index']
  #allocation1 [shape = 'u32[144,128]{1,0:T(1,128)}', space=vmem, size = 0x12000, scoped, tag = 'internal scratch']
  %s0 = inlined_call_operand.vmem [shape: f32[8,32], index: 0, kind: input, shape index: {}]
  %s1 = inlined_call_operand.vmem [shape: f32[8,100], index: 1, kind: input, shape index: {}]
  %s2 = inlined_call_operand.hbm [shape: f32[32,128], index: 2, kind: input, shape index: {}]
  %s3 = inlined_call_operand.vmem [shape: f32[100,128], index: 3, kind: input, shape index: {}]
  %s4 = inlined_call_operand.vmem [shape: f32[1,128], index: 4, kind: input, shape index: {}]
  %s5 = inlined_call_operand.vmem [shape: f32[128,128], index: 5, kind: input, shape index: {}]
  %s6 = inlined_call_operand.vmem [shape: f32[1,128], index: 6, kind: input, shape index: {}]
  %s7 = inlined_call_operand.vmem [shape: f32[128,100], index: 7, kind: input, shape index: {}]
  %s8 = inlined_call_operand.vmem [shape: f32[1,100], index: 8, kind: input, shape index: {}]
  %s9 = inlined_call_operand.hbm [shape: f32[8,100], index: 9, kind: output, shape index: {}]
  %s10 = sld [smem:[#allocation0]]
  $region50: #{tpu_custom_call.1} parent=0
    _
  %s12 = ssub.s32 1, %s10
  %s13 = scalar_select 0, %s12, %s10
  $region1: #{tpu_custom_call.1} parent=0
    #allocation2 [shape = 'u8[16384]{0}', space=vmem, size = 0x4000, scoped, tag = 'input window, operand 2, single buffered']
    #allocation3 [shape = 's32[1]{0}', space=sflag, size = 0x4, scoped, tag = 'scoped memory for tpu_custom_call.1']
    #allocation4 [shape = 's32[1]{0}', space=sflag, size = 0x4, scoped, tag = 'scoped memory for tpu_custom_call.1']
    #allocation5 [shape = 'u8[4096]{0}', space=vmem, size = 0x1000, scoped, tag = 'output window, operand 0, single buffered']
    %14 = vsyncpa [#allocation3], 0
    %15 = vsyncpa [#allocation4], 0
    // Predicated region
    $region2: #{tpu_custom_call.1} parent=1 // pred_check
      _
    $region3: #{tpu_custom_call.1} parent=1 // pred_check_branch
      %17 = sbr.rel (0) target = $region5
    $region4: #{tpu_custom_call.1} parent=1 // pred_region
      _
    $region5: #{tpu_custom_call.1} parent=1 // pred_fallthru
      _
    // Predicated region
    $region6: #{tpu_custom_call.1} parent=1 // pred_check
      _
    $region7: #{tpu_custom_call.1} parent=1 // pred_check_branch
      %19 = sbr.rel (0) target = $region9
    $region8: #{tpu_custom_call.1} parent=1 // pred_region
      _
    $region9: #{tpu_custom_call.1} parent=1 // pred_fallthru
      _
    // Predicated region
    $region10: #{tpu_custom_call.1} parent=1 // pred_check
      _
    $region11: #{tpu_custom_call.1} parent=1 // pred_check_branch
      %21 = sbr.rel (0) target = $region13
    $region12: #{tpu_custom_call.1} parent=1 // pred_region
      %s23 = ssub.s32 512, 512
      %24 = vsyncadd [#allocation3], %s23
      %s25 = sshll.u32 [#allocation2], 4
      %s26 = int_to_ptr.vmem [resolvable:$true] %s25
      %31 = dma.hbm_to_vmem [thread:$0]  %s2, 512, %s26, [#allocation3], 128, 128, 8
    $region13: #{tpu_custom_call.1} parent=1 // pred_fallthru
      _
    // Predicated region
    $region14: #{tpu_custom_call.1} parent=1 // pred_check
      _
    $region15: #{tpu_custom_call.1} parent=1 // pred_check_branch
      %33 = sbr.rel (0) target = $region17
    $region16: #{tpu_custom_call.1} parent=1 // pred_region
      _
    $region17: #{tpu_custom_call.1} parent=1 // pred_fallthru
      _
    // Predicated region
    $region18: #{tpu_custom_call.1} parent=1 // pred_check
      _
    $region19: #{tpu_custom_call.1} parent=1 // pred_check_branch
      %35 = sbr.rel (0) target = $region21
    $region20: #{tpu_custom_call.1} parent=1 // pred_region
      _
    $region21: #{tpu_custom_call.1} parent=1 // pred_fallthru
      _
    // Predicated region
    $region22: #{tpu_custom_call.1} parent=1 // pred_check
      _
    $region23: #{tpu_custom_call.1} parent=1 // pred_check_branch
      %37 = sbr.rel (0) target = $region25
    $region24: #{tpu_custom_call.1} parent=1 // pred_region
      _
    $region25: #{tpu_custom_call.1} parent=1 // pred_fallthru
      _
    // Predicated region
    $region26: #{tpu_custom_call.1} parent=1 // pred_check
      _
    $region27: #{tpu_custom_call.1} parent=1 // pred_check_branch
      %39 = sbr.rel (0) target = $region29
    $region28: #{tpu_custom_call.1} parent=1 // pred_region
      _
    $region29: #{tpu_custom_call.1} parent=1 // pred_fallthru
      _
    // Predicated region
    $region30: #{tpu_custom_call.1} parent=1 // pred_check
      _
    $region31: #{tpu_custom_call.1} parent=1 // pred_check_branch
      %41 = sbr.rel (0) target = $region33
    $region32: #{tpu_custom_call.1} parent=1 // pred_region
      _
    $region33: #{tpu_custom_call.1} parent=1 // pred_fallthru
      _
    // Predicated region
    $region34: #{tpu_custom_call.1} parent=1 // pred_check
      _
    $region35: #{tpu_custom_call.1} parent=1 // pred_check_branch
      %43 = sbr.rel (0) target = $region37
    $region36: #{tpu_custom_call.1} parent=1 // pred_region
      _
    $region37: #{tpu_custom_call.1} parent=1 // pred_fallthru
      _
    // Predicated region
    $region38: #{tpu_custom_call.1} parent=1 // pred_check
      _
    $region39: #{tpu_custom_call.1} parent=1 // pred_check_branch
      %45 = sbr.rel (0) target = $region41
    $region40: #{tpu_custom_call.1} parent=1 // pred_region
      %46 = dma.done [#allocation3], 512
    $region41: #{tpu_custom_call.1} parent=1 // pred_fallthru
      _
    %v47 = vld [vmem:[%s0] sm:$0xff]
    %v48 = vld [vmem:[#allocation2] sm:$0xff]
    %v49 = vld [vmem:[#allocation2 + $0x8] sm:$0xff]
    %v50 = vld [vmem:[#allocation2 + $0x10] sm:$0xff]
    %v51 = vld [vmem:[#allocation2 + $0x18] sm:$0xff]
    %v52 = vld [vmem:[%s1] sm:$0xff]
    %v53 = vld [vmem:[%s3] sm:$0xff]
    %v54 = vld [vmem:[%s3 + $0x8] sm:$0xff]
    %v55 = vld [vmem:[%s3 + $0x10] sm:$0xff]
    %v56 = vld [vmem:[%s3 + $0x18] sm:$0xff]
    %v57 = vld [vmem:[%s3 + $0x20] sm:$0xff]
    %v58 = vld [vmem:[%s3 + $0x28] sm:$0xff]
    %v59 = vld [vmem:[%s3 + $0x30] sm:$0xff]
    %v60 = vld [vmem:[%s3 + $0x38] sm:$0xff]
    %v61 = vld [vmem:[%s3 + $0x40] sm:$0xff]
    %v62 = vld [vmem:[%s3 + $0x48] sm:$0xff]
    %v63 = vld [vmem:[%s3 + $0x50] sm:$0xff]
    %v64 = vld [vmem:[%s3 + $0x58] sm:$0xff]
    %v65 = vld [vmem:[%s3 + $0x60] sm:$0xf]
    %vm66 = vcmask 818176
    %v68 = vsel %vm66, %v52, 0
    %vm70 = vcmask 1043456
    %v72 = vsel %vm70, %v65, 0
    %74 = vmatprep.subr.mxu0 0.0
    %75 = vmatpush1.msra.mxu0 %v53
    %76 = vmatprep.subr.mxu0 0.0
    %77 = vmatpush1.msra.mxu0 %v54
    %78 = vmatprep.subr.mxu0 0.0
    %79 = vmatpush1.msra.mxu0 %v55
    %80 = vmatprep.subr.mxu0 0.0
    %81 = vmatpush1.msra.mxu0 %v56
    %82 = vmatprep.subr.mxu0 0.0
    %83 = vmatpush1.msra.mxu0 %v57
    %84 = vmatprep.subr.mxu0 0.0
    %85 = vmatpush1.msra.mxu0 %v58
    %86 = vmatprep.subr.mxu0 0.0
    %87 = vmatpush1.msra.mxu0 %v59
    %88 = vmatprep.subr.mxu0 0.0
    %89 = vmatpush1.msra.mxu0 %v60
    %90 = vmatprep.subr.mxu0 0.0
    %91 = vmatpush1.msra.mxu0 %v61
    %92 = vmatprep.subr.mxu0 0.0
    %93 = vmatpush1.msra.mxu0 %v62
    %94 = vmatprep.subr.mxu0 0.0
    %95 = vmatpush1.msra.mxu0 %v63
    %96 = vmatprep.subr.mxu0 0.0
    %97 = vmatpush1.msra.mxu0 %v64
    %98 = vmatprep.subr.mxu0 0.0
    %99 = vmatpush1.msra.mxu0 %v72
    %100 = vmatprep.subr.mxu0 0.0
    %101 = vmatpush1.msra.mxu0 0.0
    %102 = vmatprep.subr.mxu0 0.0
    %103 = vmatpush1.msra.mxu0 0.0
    %104 = vmatprep.subr.mxu0 0.0
    %105 = vmatpush1.msra.mxu0 0.0
    %106 = vmatprep.subr.mxu0 0.0
    %107 = vmatpush1.msra.mxu0 0.0
    %108 = vmatprep.subr.mxu0 0.0
    %109 = vmatpush1.msra.mxu0 0.0
    %110 = vmatprep.subr.mxu0 0.0
    %111 = vmatpush1.msra.mxu0 0.0
    %112 = vmatprep.subr.mxu0 0.0
    %113 = vmatpush1.msra.mxu0 0.0
    %114 = vmatprep.subr.mxu0 0.0
    %115 = vmatpush1.msra.mxu0 0.0
    %116 = vmatprep.subr.mxu0 0.0
    %117 = vmatpush1.msra.mxu0 0.0
    %118 = vmatprep.subr.mxu0 0.0
    %119 = vmatpush1.msra.mxu0 0.0
    %120 = vmatprep.subr.mxu0 0.0
    %121 = vmatpush1.msra.mxu0 0.0
    %122 = vmatprep.subr.mxu0 0.0
    %123 = vmatpush1.msra.mxu0 0.0
    %124 = vmatprep.subr.mxu0 0.0
    %125 = vmatpush1.msra.mxu0 0.0
    %126 = vmatprep.subr.mxu0 0.0
    %127 = vmatpush1.msra.mxu0 0.0
    %128 = vmatprep.subr.mxu0 0.0
    %129 = vmatpush1.msra.mxu0 0.0
    %130 = vmatprep.subr.mxu0 0.0
    %131 = vmatpush1.msra.mxu0 0.0
    %132 = vmatprep.subr.mxu0 0.0
    %133 = vmatpush1.msra.mxu0 0.0
    %134 = vmatprep.subr.mxu0 0.0
    %135 = vmatpush1.msra.mxu0 0.0
    %136 = vmatprep.subr.mxu0 0.0
    %137 = vmatpush1.msra.mxu0 0.0
    %138 = vmatprep.mubr.f32.mxu0 0.0
    %139 = vmatmul.mubr.f32.gmra.mrb[0].mxu0 %v68
    %v140 = vpop.f32.mrb[0].mxu0
    %v141 = vadd.f32 0.0, %v140
    %v142 = vpop.f32.mrb[0].mxu0
    %143 = vdwg.mxu0
    %vm144 = vcmask 261120
    %v146 = vsel %vm144, %v47, 0
    %148 = vmatprep.subr.mxu0 0.0
    %149 = vmatpush1.msra.mxu0 %v48
    %150 = vmatprep.subr.mxu0 0.0
    %151 = vmatpush1.msra.mxu0 %v49
    %152 = vmatprep.subr.mxu0 0.0
    %153 = vmatpush1.msra.mxu0 %v50
    %154 = vmatprep.subr.mxu0 0.0
    %155 = vmatpush1.msra.mxu0 %v51
    %156 = vmatprep.subr.mxu0 0.0
    %157 = vmatpush1.msra.mxu0 0.0
    %158 = vmatprep.subr.mxu0 0.0
    %159 = vmatpush1.msra.mxu0 0.0
    %160 = vmatprep.subr.mxu0 0.0
    %161 = vmatpush1.msra.mxu0 0.0
    %162 = vmatprep.subr.mxu0 0.0
    %163 = vmatpush1.msra.mxu0 0.0
    %164 = vmatprep.subr.mxu0 0.0
    %165 = vmatpush1.msra.mxu0 0.0
    %166 = vmatprep.subr.mxu0 0.0
    %167 = vmatpush1.msra.mxu0 0.0
    %168 = vmatprep.subr.mxu0 0.0
    %169 = vmatpush1.msra.mxu0 0.0
    %170 = vmatprep.subr.mxu0 0.0
    %171 = vmatpush1.msra.mxu0 0.0
    %172 = vmatprep.subr.mxu0 0.0
    %173 = vmatpush1.msra.mxu0 0.0
    %174 = vmatprep.subr.mxu0 0.0
    %175 = vmatpush1.msra.mxu0 0.0
    %176 = vmatprep.subr.mxu0 0.0
    %177 = vmatpush1.msra.mxu0 0.0
    %178 = vmatprep.subr.mxu0 0.0
    %179 = vmatpush1.msra.mxu0 0.0
    %180 = vmatprep.subr.mxu0 0.0
    %181 = vmatpush1.msra.mxu0 0.0
    %182 = vmatprep.subr.mxu0 0.0
    %183 = vmatpush1.msra.mxu0 0.0
    %184 = vmatprep.subr.mxu0 0.0
    %185 = vmatpush1.msra.mxu0 0.0
    %186 = vmatprep.subr.mxu0 0.0
    %187 = vmatpush1.msra.mxu0 0.0
    %188 = vmatprep.subr.mxu0 0.0
    %189 = vmatpush1.msra.mxu0 0.0
    %190 = vmatprep.subr.mxu0 0.0
    %191 = vmatpush1.msra.mxu0 0.0
    %192 = vmatprep.subr.mxu0 0.0
    %193 = vmatpush1.msra.mxu0 0.0
    %194 = vmatprep.subr.mxu0 0.0
    %195 = vmatpush1.msra.mxu0 0.0
    %196 = vmatprep.subr.mxu0 0.0
    %197 = vmatpush1.msra.mxu0 0.0
    %198 = vmatprep.subr.mxu0 0.0
    %199 = vmatpush1.msra.mxu0 0.0
    %200 = vmatprep.subr.mxu0 0.0
    %201 = vmatpush1.msra.mxu0 0.0
    %202 = vmatprep.subr.mxu0 0.0
    %203 = vmatpush1.msra.mxu0 0.0
    %204 = vmatprep.subr.mxu0 0.0
    %205 = vmatpush1.msra.mxu0 0.0
    %206 = vmatprep.subr.mxu0 0.0
    %207 = vmatpush1.msra.mxu0 0.0
    %208 = vmatprep.subr.mxu0 0.0
    %209 = vmatpush1.msra.mxu0 0.0
    %210 = vmatprep.subr.mxu0 0.0
    %211 = vmatpush1.msra.mxu0 0.0
    %212 = vmatprep.mubr.f32.mxu0 0.0
    %213 = vmatmul.mubr.f32.gmra.mrb[0].mxu0 %v146
    %v214 = vpop.f32.mrb[0].mxu0
    %v215 = vadd.f32 %v141, %v214
    %v216 = vpop.f32.mrb[0].mxu0
    %217 = vdwg.mxu0
    %v218 = vld [vmem:[%s4] sm:$0x1]
    %v220 = vlaneseq
    %v221 = vshrl.u32 %v220, 7
    %v222 = vsub.s32 0, %v221
    %v223 = vrot.slane %v218, %v222
    %v225 = vadd.f32 %v215, %v223
    %v226 = vmax.f32 %v225, 0.0
    %v227 = vld [vmem:[%s5] sm:$0xff]
    %v228 = vld [vmem:[%s5 + $0x8] sm:$0xff]
    %v229 = vld [vmem:[%s5 + $0x10] sm:$0xff]
    %v230 = vld [vmem:[%s5 + $0x18] sm:$0xff]
    %v231 = vld [vmem:[%s5 + $0x20] sm:$0xff]
    %v232 = vld [vmem:[%s5 + $0x28] sm:$0xff]
    %v233 = vld [vmem:[%s5 + $0x30] sm:$0xff]
    %v234 = vld [vmem:[%s5 + $0x38] sm:$0xff]
    %v235 = vld [vmem:[%s5 + $0x40] sm:$0xff]
    %v236 = vld [vmem:[%s5 + $0x48] sm:$0xff]
    %v237 = vld [vmem:[%s5 + $0x50] sm:$0xff]
    %v238 = vld [vmem:[%s5 + $0x58] sm:$0xff]
    %v239 = vld [vmem:[%s5 + $0x60] sm:$0xff]
    %v240 = vld [vmem:[%s5 + $0x68] sm:$0xff]
    %v241 = vld [vmem:[%s5 + $0x70] sm:$0xff]
    %v242 = vld [vmem:[%s5 + $0x78] sm:$0xff]
    %v243 = vld [vmem:[%s6] sm:$0x1]
    %v245 = vlaneseq
    %v246 = vshrl.u32 %v245, 7
    %v247 = vsub.s32 0, %v246
    %v248 = vrot.slane %v243, %v247
    %250 = vmatprep.subr.mxu0 0.0
    %251 = vmatpush1.msra.mxu0 %v227
    %252 = vmatprep.subr.mxu0 0.0
    %253 = vmatpush1.msra.mxu0 %v228
    %254 = vmatprep.subr.mxu0 0.0
    %255 = vmatpush1.msra.mxu0 %v229
    %256 = vmatprep.subr.mxu0 0.0
    %257 = vmatpush1.msra.mxu0 %v230
    %258 = vmatprep.subr.mxu0 0.0
    %259 = vmatpush1.msra.mxu0 %v231
    %260 = vmatprep.subr.mxu0 0.0
    %261 = vmatpush1.msra.mxu0 %v232
    %262 = vmatprep.subr.mxu0 0.0
    %263 = vmatpush1.msra.mxu0 %v233
    %264 = vmatprep.subr.mxu0 0.0
    %265 = vmatpush1.msra.mxu0 %v234
    %266 = vmatprep.subr.mxu0 0.0
    %267 = vmatpush1.msra.mxu0 %v235
    %268 = vmatprep.subr.mxu0 0.0
    %269 = vmatpush1.msra.mxu0 %v236
    %270 = vmatprep.subr.mxu0 0.0
    %271 = vmatpush1.msra.mxu0 %v237
    %272 = vmatprep.subr.mxu0 0.0
    %273 = vmatpush1.msra.mxu0 %v238
    %274 = vmatprep.subr.mxu0 0.0
    %275 = vmatpush1.msra.mxu0 %v239
    %276 = vmatprep.subr.mxu0 0.0
    %277 = vmatpush1.msra.mxu0 %v240
    %278 = vmatprep.subr.mxu0 0.0
    %279 = vmatpush1.msra.mxu0 %v241
    %280 = vmatprep.subr.mxu0 0.0
    %281 = vmatpush1.msra.mxu0 %v242
    %282 = vmatprep.subr.mxu0 0.0
    %283 = vmatpush1.msra.mxu0 0.0
    %284 = vmatprep.subr.mxu0 0.0
    %285 = vmatpush1.msra.mxu0 0.0
    %286 = vmatprep.subr.mxu0 0.0
    %287 = vmatpush1.msra.mxu0 0.0
    %288 = vmatprep.subr.mxu0 0.0
    %289 = vmatpush1.msra.mxu0 0.0
    %290 = vmatprep.subr.mxu0 0.0
    %291 = vmatpush1.msra.mxu0 0.0
    %292 = vmatprep.subr.mxu0 0.0
    %293 = vmatpush1.msra.mxu0 0.0
    %294 = vmatprep.subr.mxu0 0.0
    %295 = vmatpush1.msra.mxu0 0.0
    %296 = vmatprep.subr.mxu0 0.0
    %297 = vmatpush1.msra.mxu0 0.0
    %298 = vmatprep.subr.mxu0 0.0
    %299 = vmatpush1.msra.mxu0 0.0
    %300 = vmatprep.subr.mxu0 0.0
    %301 = vmatpush1.msra.mxu0 0.0
    %302 = vmatprep.subr.mxu0 0.0
    %303 = vmatpush1.msra.mxu0 0.0
    %304 = vmatprep.subr.mxu0 0.0
    %305 = vmatpush1.msra.mxu0 0.0
    %306 = vmatprep.subr.mxu0 0.0
    %307 = vmatpush1.msra.mxu0 0.0
    %308 = vmatprep.subr.mxu0 0.0
    %309 = vmatpush1.msra.mxu0 0.0
    %310 = vmatprep.subr.mxu0 0.0
    %311 = vmatpush1.msra.mxu0 0.0
    %312 = vmatprep.subr.mxu0 0.0
    %313 = vmatpush1.msra.mxu0 0.0
    %314 = vmatprep.mubr.f32.mxu0 0.0
    %315 = vmatmul.mubr.f32.gmra.mrb[0].mxu0 %v226
    %v316 = vpop.f32.mrb[0].mxu0
    %v317 = vadd.f32 %v248, %v316
    %v318 = vpop.f32.mrb[0].mxu0
    %319 = vdwg.mxu0
    %v320 = vmax.f32 %v317, 0.0
    %v321 = vld [vmem:[%s7] sm:$0xff]
    %v322 = vld [vmem:[%s7 + $0x8] sm:$0xff]
    %v323 = vld [vmem:[%s7 + $0x10] sm:$0xff]
    %v324 = vld [vmem:[%s7 + $0x18] sm:$0xff]
    %v325 = vld [vmem:[%s7 + $0x20] sm:$0xff]
    %v326 = vld [vmem:[%s7 + $0x28] sm:$0xff]
    %v327 = vld [vmem:[%s7 + $0x30] sm:$0xff]
    %v328 = vld [vmem:[%s7 + $0x38] sm:$0xff]
    %v329 = vld [vmem:[%s7 + $0x40] sm:$0xff]
    %v330 = vld [vmem:[%s7 + $0x48] sm:$0xff]
    %v331 = vld [vmem:[%s7 + $0x50] sm:$0xff]
    %v332 = vld [vmem:[%s7 + $0x58] sm:$0xff]
    %v333 = vld [vmem:[%s7 + $0x60] sm:$0xff]
    %v334 = vld [vmem:[%s7 + $0x68] sm:$0xff]
    %v335 = vld [vmem:[%s7 + $0x70] sm:$0xff]
    %v336 = vld [vmem:[%s7 + $0x78] sm:$0xff]
    %v337 = vld [vmem:[%s8] sm:$0x1]
    %v339 = vlaneseq
    %v340 = vshrl.u32 %v339, 7
    %v341 = vsub.s32 0, %v340
    %v342 = vrot.slane %v337, %v341
    %344 = vmatprep.subr.mxu0 0.0
    %345 = vmatpush1.msra.mxu0 %v321
    %346 = vmatprep.subr.mxu0 0.0
    %347 = vmatpush1.msra.mxu0 %v322
    %348 = vmatprep.subr.mxu0 0.0
    %349 = vmatpush1.msra.mxu0 %v323
    %350 = vmatprep.subr.mxu0 0.0
    %351 = vmatpush1.msra.mxu0 %v324
    %352 = vmatprep.subr.mxu0 0.0
    %353 = vmatpush1.msra.mxu0 %v325
    %354 = vmatprep.subr.mxu0 0.0
    %355 = vmatpush1.msra.mxu0 %v326
    %356 = vmatprep.subr.mxu0 0.0
    %357 = vmatpush1.msra.mxu0 %v327
    %358 = vmatprep.subr.mxu0 0.0
    %359 = vmatpush1.msra.mxu0 %v328
    %360 = vmatprep.subr.mxu0 0.0
    %361 = vmatpush1.msra.mxu0 %v329
    %362 = vmatprep.subr.mxu0 0.0
    %363 = vmatpush1.msra.mxu0 %v330
    %364 = vmatprep.subr.mxu0 0.0
    %365 = vmatpush1.msra.mxu0 %v331
    %366 = vmatprep.subr.mxu0 0.0
    %367 = vmatpush1.msra.mxu0 %v332
    %368 = vmatprep.subr.mxu0 0.0
    %369 = vmatpush1.msra.mxu0 %v333
    %370 = vmatprep.subr.mxu0 0.0
    %371 = vmatpush1.msra.mxu0 %v334
    %372 = vmatprep.subr.mxu0 0.0
    %373 = vmatpush1.msra.mxu0 %v335
    %374 = vmatprep.subr.mxu0 0.0
    %375 = vmatpush1.msra.mxu0 %v336
    %376 = vmatprep.subr.mxu0 0.0
    %377 = vmatpush1.msra.mxu0 0.0
    %378 = vmatprep.subr.mxu0 0.0
    %379 = vmatpush1.msra.mxu0 0.0
    %380 = vmatprep.subr.mxu0 0.0
    %381 = vmatpush1.msra.mxu0 0.0
    %382 = vmatprep.subr.mxu0 0.0
    %383 = vmatpush1.msra.mxu0 0.0
    %384 = vmatprep.subr.mxu0 0.0
    %385 = vmatpush1.msra.mxu0 0.0
    %386 = vmatprep.subr.mxu0 0.0
    %387 = vmatpush1.msra.mxu0 0.0
    %388 = vmatprep.subr.mxu0 0.0
    %389 = vmatpush1.msra.mxu0 0.0
    %390 = vmatprep.subr.mxu0 0.0
    %391 = vmatpush1.msra.mxu0 0.0
    %392 = vmatprep.subr.mxu0 0.0
    %393 = vmatpush1.msra.mxu0 0.0
    %394 = vmatprep.subr.mxu0 0.0
    %395 = vmatpush1.msra.mxu0 0.0
    %396 = vmatprep.subr.mxu0 0.0
    %397 = vmatpush1.msra.mxu0 0.0
    %398 = vmatprep.subr.mxu0 0.0
    %399 = vmatpush1.msra.mxu0 0.0
    %400 = vmatprep.subr.mxu0 0.0
    %401 = vmatpush1.msra.mxu0 0.0
    %402 = vmatprep.subr.mxu0 0.0
    %403 = vmatpush1.msra.mxu0 0.0
    %404 = vmatprep.subr.mxu0 0.0
    %405 = vmatpush1.msra.mxu0 0.0
    %406 = vmatprep.subr.mxu0 0.0
    %407 = vmatpush1.msra.mxu0 0.0
    %408 = vmatprep.mubr.f32.mxu0 0.0
    %409 = vmatmul.mubr.f32.gmra.mrb[0].mxu0 %v320
    %v410 = vpop.f32.mrb[0].mxu0
    %v411 = vadd.f32 %v342, %v410
    %v412 = vpop.f32.mrb[0].mxu0
    %413 = vdwg.mxu0
    %v414 = vmax.f32 %v411, 0.0
    %415 = vst.msk [vmem:[#allocation5] sm:$0xff] %vm66, %v414
    // Predicated region
    $region42: #{tpu_custom_call.1} parent=1 // pred_check
      _
    $region43: #{tpu_custom_call.1} parent=1 // pred_check_branch
      %417 = sbr.rel (0) target = $region45
    $region44: #{tpu_custom_call.1} parent=1 // pred_region
      %s419 = ssub.s32 128, 128
      %420 = vsyncadd [#allocation4], %s419
      %s422 = sshll.u32 [#allocation5], 4
      %s423 = int_to_ptr.vmem [resolvable:$true] %s422
      %425 = dma.vmem_to_hbm [thread:$0]  %s423, 128, %s9, [#allocation4]
    $region45: #{tpu_custom_call.1} parent=1 // pred_fallthru
      _
    // Predicated region
    $region46: #{tpu_custom_call.1} parent=1 // pred_check
      _
    $region47: #{tpu_custom_call.1} parent=1 // pred_check_branch
      %427 = sbr.rel (0) target = $region49
    $region48: #{tpu_custom_call.1} parent=1 // pred_region
      %428 = dma.done [#allocation4], 128
    $region49: #{tpu_custom_call.1} parent=1 // pred_fallthru
      _
    %429 = vsyncpa [#allocation3], 1
    %430 = vsyncpa [#allocation4], 1

</llo_original>
